<compile_context>
chip_gen: v5e
topology: v5e:2x2
jax: 0.10.0
libtpu: 0.0.40
codegen_flags: <defaults>
</compile_context>

<pallas_src>
import jax
import jax.numpy as jnp
import numpy as np
from jax.experimental import pallas as pl
from jax.experimental.pallas import tpu as pltpu


# ---------------------------------------------------------------------------
# Pallas kernel: one (batch, channel-block) tile per grid step, full H x W resident
# ---------------------------------------------------------------------------
def _token_mixer_kernel(x_ref, scale_ref, shift_ref, o_ref):
    # x_ref / o_ref : (1, cb, H, W)   scale_ref / shift_ref : (cb, 1, W)
    _, cb, H, W = x_ref.shape
    g = cb // 5

    x = x_ref[0]                                   # (cb, H, W)
    xg = x.reshape(g, 5, H, W)                     # channel = 5*group + residue (free reshape)

    x0 = xg[:, 0]                                  # residue 0..4, each (g, H, W)
    x1 = xg[:, 1]
    x2 = xg[:, 2]
    x3 = xg[:, 3]
    x4 = xg[:, 4]

    # One-pixel circular shifts (lane / sublane concatenations -> XLU rotates).
    m0 = jnp.concatenate([x0[:, :, 1:], x0[:, :, :1]], axis=2)          # x[h, (w+1)%W]
    m1 = jnp.concatenate([x1[:, :, W - 1:], x1[:, :, :W - 1]], axis=2)  # x[h, (w-1)%W]
    m2 = jnp.concatenate([x2[:, 1:, :], x2[:, :1, :]], axis=1)          # x[(h+1)%H, w]
    m3 = jnp.concatenate([x3[:, H - 1:, :], x3[:, :H - 1, :]], axis=1)  # x[(h-1)%H, w]
    m4 = x4                                                             # identity

    mixed = jnp.stack([m0, m1, m2, m3, m4], axis=1).reshape(cb, H, W)

    z = (mixed - x).astype(jnp.float32)            # PixelMixer(x) - x
    y = z * scale_ref[...] + shift_ref[...]        # folded eval-mode BatchNorm2d
    o_ref[0] = y.astype(o_ref.dtype)


def _pick_channel_block(C, H, W, itemsize, max_block_bytes=2 << 20):
    """Largest multiple-of-5 divisor of C whose (cb, H, W) block fits the VMEM budget."""
    cb = 5
    for cand in range(5, C + 1, 5):
        if C % cand == 0 and cand * H * W * itemsize <= max_block_bytes:
            cb = cand
    # TODO(synk): if even cb=5 exceeds the budget (very large H*W), tile over H with a
    #             1-row circular halo via manual pltpu.make_async_copy.
    return cb


def token_mixer_pallas(x, gamma, beta, running_mean, running_var, *, eps=1e-5,
                       channel_block=None):
    """x: (B, C, H, W). Eval-mode TokenMixer: BatchNorm2d(PixelMixer(x) - x)."""
    B, C, H, W = x.shape
    if C % 5 != 0:
        raise ValueError(f"PixelMixer requires C % 5 == 0, got C={C}")

    # Fold eval-mode BatchNorm2d into per-channel scale / shift.
    scale = (gamma / jnp.sqrt(running_var + eps)).astype(jnp.float32)
    shift = (beta - running_mean * scale).astype(jnp.float32)
    # Pre-broadcast along W so the in-kernel broadcast is sublane-only (cheap & proven).
    scale_b = jnp.broadcast_to(scale[:, None, None], (C, 1, W))
    shift_b = jnp.broadcast_to(shift[:, None, None], (C, 1, W))

    cb = channel_block if channel_block is not None else _pick_channel_block(
        C, H, W, x.dtype.itemsize)
    assert C % cb == 0 and cb % 5 == 0, (C, cb)

    return pl.pallas_call(
        _token_mixer_kernel,
        out_shape=jax.ShapeDtypeStruct((B, C, H, W), x.dtype),
        grid_spec=pltpu.PrefetchScalarGridSpec(
            num_scalar_prefetch=0,
            grid=(B, C // cb),
            in_specs=[
                pl.BlockSpec((1, cb, H, W), lambda b, c: (b, c, 0, 0)),
                pl.BlockSpec((cb, 1, W), lambda b, c: (c, 0, 0)),
                pl.BlockSpec((cb, 1, W), lambda b, c: (c, 0, 0)),
            ],
            out_specs=pl.BlockSpec((1, cb, H, W), lambda b, c: (b, c, 0, 0)),
        ),
        compiler_params=pltpu.CompilerParams(
            dimension_semantics=("parallel", "parallel"),
            vmem_limit_bytes=32 * 1024 * 1024,
        ),
    )(x, scale_b, shift_b)


# ---------------------------------------------------------------------------
# Pure-JAX reference (independent formulation: roll + where) for correctness check
# ---------------------------------------------------------------------------
def token_mixer_ref(x, gamma, beta, running_mean, running_var, eps=1e-5):
    B, C, H, W = x.shape
    r = (jnp.arange(C) % 5).reshape(1, C, 1, 1)
    left = jnp.roll(x, -1, axis=3)    # x[h, (w+1)%W]
    right = jnp.roll(x, 1, axis=3)    # x[h, (w-1)%W]
    up = jnp.roll(x, -1, axis=2)      # x[(h+1)%H, w]
    down = jnp.roll(x, 1, axis=2)     # x[(h-1)%H, w]
    mixed = jnp.where(r == 0, left,
            jnp.where(r == 1, right,
            jnp.where(r == 2, up,
            jnp.where(r == 3, down, x))))
    z = mixed - x
    scale = gamma / jnp.sqrt(running_var + eps)
    shift = beta - running_mean * scale
    return z * scale.reshape(1, C, 1, 1) + shift.reshape(1, C, 1, 1)


# ---------------------------------------------------------------------------
if __name__ == "__main__":
    # dim must be divisible by 5 (PixelMixer constraint); W = 128 keeps lanes dense.
    B, C, H, W = 2, 20, 16, 128

    key = jax.random.PRNGKey(0)
    k1, k2, k3, k4, k5 = jax.random.split(key, 5)
    x = jax.random.normal(k1, (B, C, H, W), dtype=jnp.float32)
    gamma = 1.0 + 0.1 * jax.random.normal(k2, (C,), dtype=jnp.float32)
    beta = 0.1 * jax.random.normal(k3, (C,), dtype=jnp.float32)
    running_mean = 0.1 * jax.random.normal(k4, (C,), dtype=jnp.float32)
    running_var = 1.0 + 0.1 * jnp.abs(jax.random.normal(k5, (C,), dtype=jnp.float32))

    out = jax.block_until_ready(
        token_mixer_pallas(x, gamma, beta, running_mean, running_var))
    ref = jax.block_until_ready(
        token_mixer_ref(x, gamma, beta, running_mean, running_var))

    assert out.shape == (B, C, H, W), out.shape
    np.testing.assert_allclose(np.asarray(out), np.asarray(ref), atol=1e-5, rtol=1e-5)
    print("KERNEL_OK")
</pallas_src>

<mosaic_0001>
module attributes {stable_mosaic.version = 11 : i64} {
  func.func @_token_mixer_kernel(%arg0: i32, %arg1: i32, %arg2: memref<1x20x16x128xf32, #tpu.memory_space<vmem>>, %arg3: memref<20x1x128xf32, #tpu.memory_space<vmem>>, %arg4: memref<20x1x128xf32, #tpu.memory_space<vmem>>, %arg5: memref<1x20x16x128xf32, #tpu.memory_space<vmem>>) attributes {dimension_semantics = [#tpu.dimension_semantics<parallel>, #tpu.dimension_semantics<parallel>], iteration_bounds = array<i64: 2, 1>, scalar_prefetch = 0 : i64, scratch_operands = 0 : i64, tpu.core_type = #tpu.core_type<tc>, window_params = [{transform_indices = @transform_0, window_bounds = array<i64: 1, 20, 16, 128>}, {transform_indices = @transform_1, window_bounds = array<i64: 20, 1, 128>}, {transform_indices = @transform_2, window_bounds = array<i64: 20, 1, 128>}, {transform_indices = @transform_3, window_bounds = array<i64: 1, 20, 16, 128>}]} {
    %c0 = arith.constant 0 : index
    %c0_0 = arith.constant 0 : index
    %c0_1 = arith.constant 0 : index
    %c0_2 = arith.constant 0 : index
    %0 = vector.load %arg2[%c0, %c0_0, %c0_1, %c0_2] : memref<1x20x16x128xf32, #tpu.memory_space<vmem>>, vector<1x20x16x128xf32>
    %1 = vector.shape_cast %0 : vector<1x20x16x128xf32> to vector<20x16x128xf32>
    %2 = vector.shape_cast %1 : vector<20x16x128xf32> to vector<4x5x16x128xf32>
    %3 = vector.extract_strided_slice %2 {offsets = [0, 0, 0, 0], sizes = [4, 1, 16, 128], strides = [1, 1, 1, 1]} : vector<4x5x16x128xf32> to vector<4x1x16x128xf32>
    %4 = vector.shape_cast %3 : vector<4x1x16x128xf32> to vector<4x16x128xf32>
    %5 = vector.extract_strided_slice %2 {offsets = [0, 1, 0, 0], sizes = [4, 1, 16, 128], strides = [1, 1, 1, 1]} : vector<4x5x16x128xf32> to vector<4x1x16x128xf32>
    %6 = vector.shape_cast %5 : vector<4x1x16x128xf32> to vector<4x16x128xf32>
    %7 = vector.extract_strided_slice %2 {offsets = [0, 2, 0, 0], sizes = [4, 1, 16, 128], strides = [1, 1, 1, 1]} : vector<4x5x16x128xf32> to vector<4x1x16x128xf32>
    %8 = vector.shape_cast %7 : vector<4x1x16x128xf32> to vector<4x16x128xf32>
    %9 = vector.extract_strided_slice %2 {offsets = [0, 3, 0, 0], sizes = [4, 1, 16, 128], strides = [1, 1, 1, 1]} : vector<4x5x16x128xf32> to vector<4x1x16x128xf32>
    %10 = vector.shape_cast %9 : vector<4x1x16x128xf32> to vector<4x16x128xf32>
    %11 = vector.extract_strided_slice %2 {offsets = [0, 4, 0, 0], sizes = [4, 1, 16, 128], strides = [1, 1, 1, 1]} : vector<4x5x16x128xf32> to vector<4x1x16x128xf32>
    %12 = vector.shape_cast %11 : vector<4x1x16x128xf32> to vector<4x16x128xf32>
    %13 = vector.extract_strided_slice %4 {offsets = [0, 0, 1], sizes = [4, 16, 127], strides = [1, 1, 1]} : vector<4x16x128xf32> to vector<4x16x127xf32>
    %14 = vector.extract_strided_slice %4 {offsets = [0, 0, 0], sizes = [4, 16, 1], strides = [1, 1, 1]} : vector<4x16x128xf32> to vector<4x16x1xf32>
    %15 = tpu.concatenate %13, %14 in 2 : vector<4x16x127xf32>, vector<4x16x1xf32> -> vector<4x16x128xf32>
    %16 = vector.extract_strided_slice %6 {offsets = [0, 0, 127], sizes = [4, 16, 1], strides = [1, 1, 1]} : vector<4x16x128xf32> to vector<4x16x1xf32>
    %17 = vector.extract_strided_slice %6 {offsets = [0, 0, 0], sizes = [4, 16, 127], strides = [1, 1, 1]} : vector<4x16x128xf32> to vector<4x16x127xf32>
    %18 = tpu.concatenate %16, %17 in 2 : vector<4x16x1xf32>, vector<4x16x127xf32> -> vector<4x16x128xf32>
    %19 = vector.extract_strided_slice %8 {offsets = [0, 1, 0], sizes = [4, 15, 128], strides = [1, 1, 1]} : vector<4x16x128xf32> to vector<4x15x128xf32>
    %20 = vector.extract_strided_slice %8 {offsets = [0, 0, 0], sizes = [4, 1, 128], strides = [1, 1, 1]} : vector<4x16x128xf32> to vector<4x1x128xf32>
    %21 = tpu.concatenate %19, %20 in 1 : vector<4x15x128xf32>, vector<4x1x128xf32> -> vector<4x16x128xf32>
    %22 = vector.extract_strided_slice %10 {offsets = [0, 15, 0], sizes = [4, 1, 128], strides = [1, 1, 1]} : vector<4x16x128xf32> to vector<4x1x128xf32>
    %23 = vector.extract_strided_slice %10 {offsets = [0, 0, 0], sizes = [4, 15, 128], strides = [1, 1, 1]} : vector<4x16x128xf32> to vector<4x15x128xf32>
    %24 = tpu.concatenate %22, %23 in 1 : vector<4x1x128xf32>, vector<4x15x128xf32> -> vector<4x16x128xf32>
    %25 = vector.shape_cast %15 : vector<4x16x128xf32> to vector<4x1x16x128xf32>
    %26 = vector.shape_cast %18 : vector<4x16x128xf32> to vector<4x1x16x128xf32>
    %27 = vector.shape_cast %21 : vector<4x16x128xf32> to vector<4x1x16x128xf32>
    %28 = vector.shape_cast %24 : vector<4x16x128xf32> to vector<4x1x16x128xf32>
    %29 = vector.shape_cast %12 : vector<4x16x128xf32> to vector<4x1x16x128xf32>
    %30 = tpu.concatenate %25, %26, %27, %28, %29 in 1 : vector<4x1x16x128xf32>, vector<4x1x16x128xf32>, vector<4x1x16x128xf32>, vector<4x1x16x128xf32>, vector<4x1x16x128xf32> -> vector<4x5x16x128xf32>
    %31 = vector.shape_cast %30 : vector<4x5x16x128xf32> to vector<20x16x128xf32>
    %32 = arith.subf %31, %1 : vector<20x16x128xf32>
    %c0_3 = arith.constant 0 : index
    %c0_4 = arith.constant 0 : index
    %c0_5 = arith.constant 0 : index
    %33 = vector.load %arg3[%c0_3, %c0_4, %c0_5] : memref<20x1x128xf32, #tpu.memory_space<vmem>>, vector<20x1x128xf32>
    %34 = vector.broadcast %33 : vector<20x1x128xf32> to vector<20x16x128xf32>
    %35 = arith.mulf %32, %34 : vector<20x16x128xf32>
    %c0_6 = arith.constant 0 : index
    %c0_7 = arith.constant 0 : index
    %c0_8 = arith.constant 0 : index
    %36 = vector.load %arg4[%c0_6, %c0_7, %c0_8] : memref<20x1x128xf32, #tpu.memory_space<vmem>>, vector<20x1x128xf32>
    %37 = vector.broadcast %36 : vector<20x1x128xf32> to vector<20x16x128xf32>
    %38 = arith.addf %35, %37 : vector<20x16x128xf32>
    %c0_9 = arith.constant 0 : index
    %c0_10 = arith.constant 0 : index
    %c0_11 = arith.constant 0 : index
    %c0_12 = arith.constant 0 : index
    %39 = vector.load %arg5[%c0_9, %c0_10, %c0_11, %c0_12] : memref<1x20x16x128xf32, #tpu.memory_space<vmem>>, vector<1x20x16x128xf32>
    %40 = vector.shape_cast %39 : vector<1x20x16x128xf32> to vector<20x16x128xf32>
    %41 = vector.shape_cast %38 : vector<20x16x128xf32> to vector<1x20x16x128xf32>
    tpu.vector_store %arg5[%c0_9, %c0_10, %c0_11, %c0_12], %41 {strides = array<i32>} : memref<1x20x16x128xf32, #tpu.memory_space<vmem>>, vector<1x20x16x128xf32>,
    return
  }
  func.func @transform_0(%arg0: i32, %arg1: i32) -> (i32, i32, i32, i32) {
    %c0_i32 = arith.constant 0 : i32
    %c0_i32_0 = arith.constant 0 : i32
    %c0_i32_1 = arith.constant 0 : i32
    return %arg0, %arg1, %c0_i32, %c0_i32_0 : i32, i32, i32, i32
  }
  func.func @transform_1(%arg0: i32, %arg1: i32) -> (i32, i32, i32) {
    %c0_i32 = arith.constant 0 : i32
    %c0_i32_0 = arith.constant 0 : i32
    %c0_i32_1 = arith.constant 0 : i32
    return %arg1, %c0_i32, %c0_i32_0 : i32, i32, i32
  }
  func.func @transform_2(%arg0: i32, %arg1: i32) -> (i32, i32, i32) {
    %c0_i32 = arith.constant 0 : i32
    %c0_i32_0 = arith.constant 0 : i32
    %c0_i32_1 = arith.constant 0 : i32
    return %arg1, %c0_i32, %c0_i32_0 : i32, i32, i32
  }
  func.func @transform_3(%arg0: i32, %arg1: i32) -> (i32, i32, i32, i32) {
    %c0_i32 = arith.constant 0 : i32
    %c0_i32_0 = arith.constant 0 : i32
    %c0_i32_1 = arith.constant 0 : i32
    return %arg0, %arg1, %c0_i32, %c0_i32_0 : i32, i32, i32, i32
  }
}

</mosaic_0001>

<llo_original>
// kernel: tpu_custom_call.1
$region0: #{tpu_custom_call.1}
  #allocation0 [shape = 'u32[]', space=smem, size = 0x4, offset = 0x4, fixed_abs, tag = 'smem constant byte address 0x4 - core index']
  #allocation1 [shape = 'u32[72,128]{1,0:T(1,128)}', space=vmem, size = 0x9000, scoped, tag = 'internal scratch']
  %s0 = inlined_call_operand.hbm [shape: f32[2,20,16,128], index: 0, kind: input, shape index: {}]
  %s1 = inlined_call_operand.hbm [shape: f32[20,1,128], index: 1, kind: input, shape index: {}]
  %s2 = inlined_call_operand.hbm [shape: f32[20,1,128], index: 2, kind: input, shape index: {}]
  %s3 = inlined_call_operand.hbm [shape: f32[2,20,16,128], index: 3, kind: output, shape index: {}]
  %s4 = sld [smem:[#allocation0]]
  $region57: #{tpu_custom_call.1} parent=0
    _
  %s6 = ssub.s32 1, %s4
  %s7 = scalar_select 0, %s6, %s4
  $region1: #{tpu_custom_call.1} parent=0
    #allocation2 [shape = 'u8[327680]{0}', space=vmem, size = 0x50000, scoped, tag = 'input window, operand 0']
    #allocation3 [shape = 's32[2]{0}', space=sflag, size = 0x8, scoped, tag = 'scoped memory for tpu_custom_call.1']
    #allocation4 [shape = 's32[2]{0}', space=sflag, size = 0x8, scoped, tag = 'scoped memory for tpu_custom_call.1']
    #allocation5 [shape = 'u8[10240]{0}', space=vmem, size = 0x2800, scoped, tag = 'input window, operand 1, single buffered']
    #allocation6 [shape = 's32[1]{0}', space=sflag, size = 0x4, scoped, tag = 'scoped memory for tpu_custom_call.1']
    #allocation7 [shape = 'u8[10240]{0}', space=vmem, size = 0x2800, scoped, tag = 'input window, operand 2, single buffered']
    #allocation8 [shape = 'u8[327680]{0}', space=vmem, size = 0x50000, scoped, tag = 'output window, operand 0']
    %8 = vsyncpa [#allocation3], 0
    %s9 = scalar_lea.sflag [#allocation3], 1
    %10 = vsyncpa %s9, 0
    %11 = vsyncpa [#allocation6], 0
    %12 = vsyncpa [#allocation4], 0
    %s13 = scalar_lea.sflag [#allocation4], 1
    %14 = vsyncpa %s13, 0
    loop: start=0, step=1, limit=4
    $region2: #{tpu_custom_call.1} parent=1 // loop_pre_header
      _
    $region3: #{tpu_custom_call.1} parent=1 // loop_header
      %s16 = sphi 0, %s20
      %p17 = scmp.ge.s32.totalorder %s16, 4
      %s23 = sphi 0, %s35
      %s24 = sphi 0, %s31
      %s25 = sphi 0, %s23
      %s26 = sphi 0, %s24
      %s27 = sphi 0, %s25
      %s28 = sphi 0, %s26
      %s40 = sphi 0, %s42
      %s43 = sphi 0, %s40
      %s44 = sphi 0, %s43
      %s60 = sphi 0, %s44
      %s66 = sphi 0, %s68
      %s69 = sphi 0, %s66
      %s70 = sphi 0, %s69
      %s86 = sphi 0, %s70
      %s92 = sphi 0, %s94
      %s95 = sphi 0, %s92
      %s96 = sphi 0, %s95
      %s112 = sphi 0, %s96
      %s120 = sphi 0, %s122
      %s123 = sphi 0, %s120
      %s124 = sphi 0, %s123
      %s140 = sphi 0, %s124
    $region4: #{tpu_custom_call.1} parent=1 // loop_header_branch
      %19 = sbr.rel (%p17) target = $region8
    $region5: #{tpu_custom_call.1} parent=1 // loop_body
      %s21 = ssub.s32 %s16, 1
      %s22 = ssub.s32 %s16, 2
      %s29 = sadd.s32 1, %s24
      %p30 = scmp.ge.s32.totalorder %s29, 1
      %s31 = scalar_select %p30, 0, %s29
      %s32 = sadd.s32 1, %s23
      %s33 = scalar_select %p30, %s32, %s23
      %p34 = scmp.ge.s32.totalorder %s33, 2
      %s35 = scalar_select %p34, 0, %s33
      %s36 = ssub.s32 %s23, %s35
      %s37 = ssub.s32 %s24, %s31
      %s38 = sor.u32 %s36, %s37
      %p39 = scmp.eq.s32.totalorder %s38, 0
      %s41 = sadd.s32 %s40, 1
      %s42 = scalar_select %p39, %s40, %s41
      %p45 = pneg %p39
      %p46 = scmp.eq.s32.totalorder %s16, 1
      %p47 = por %p45, %p46
      %p48 = scmp.ne.s32.totalorder %s40, %s43
      %p49 = scmp.eq.s32.totalorder %s16, 0
      %p50 = por %p48, %p49
      %p51 = scmp.ne.s32.totalorder %s40, %s43
      %p52 = scmp.eq.s32.totalorder %s21, 1
      %p53 = por %p51, %p52
      %p54 = scmp.ne.s32.totalorder %s43, %s44
      %p55 = scmp.eq.s32.totalorder %s21, 0
      %p56 = por %p54, %p55
      %p57 = scmp.ne.s32.totalorder %s43, %s44
      %p58 = scmp.eq.s32.totalorder %s22, 1
      %p59 = por %p57, %p58
      %p61 = scmp.ne.s32.totalorder %s44, %s60
      %p62 = scmp.eq.s32.totalorder %s22, 0
      %p63 = por %p61, %p62
      %s64 = ssub.s32 %s24, %s31
      %p65 = scmp.eq.s32.totalorder %s64, 0
      %s67 = sadd.s32 %s66, 1
      %s68 = scalar_select %p65, %s66, %s67
      %p71 = pneg %p65
      %p72 = scmp.eq.s32.totalorder %s16, 1
      %p73 = por %p71, %p72
      %p74 = scmp.ne.s32.totalorder %s66, %s69
      %p75 = scmp.eq.s32.totalorder %s16, 0
      %p76 = por %p74, %p75
      %p77 = scmp.ne.s32.totalorder %s66, %s69
      %p78 = scmp.eq.s32.totalorder %s21, 1
      %p79 = por %p77, %p78
      %p80 = scmp.ne.s32.totalorder %s69, %s70
      %p81 = scmp.eq.s32.totalorder %s21, 0
      %p82 = por %p80, %p81
      %p83 = scmp.ne.s32.totalorder %s69, %s70
      %p84 = scmp.eq.s32.totalorder %s22, 1
      %p85 = por %p83, %p84
      %p87 = scmp.ne.s32.totalorder %s70, %s86
      %p88 = scmp.eq.s32.totalorder %s22, 0
      %p89 = por %p87, %p88
      %s90 = ssub.s32 %s24, %s31
      %p91 = scmp.eq.s32.totalorder %s90, 0
      %s93 = sadd.s32 %s92, 1
      %s94 = scalar_select %p91, %s92, %s93
      %p97 = pneg %p91
      %p98 = scmp.eq.s32.totalorder %s16, 1
      %p99 = por %p97, %p98
      %p100 = scmp.ne.s32.totalorder %s92, %s95
      %p101 = scmp.eq.s32.totalorder %s16, 0
      %p102 = por %p100, %p101
      %p103 = scmp.ne.s32.totalorder %s92, %s95
      %p104 = scmp.eq.s32.totalorder %s21, 1
      %p105 = por %p103, %p104
      %p106 = scmp.ne.s32.totalorder %s95, %s96
      %p107 = scmp.eq.s32.totalorder %s21, 0
      %p108 = por %p106, %p107
      %p109 = scmp.ne.s32.totalorder %s95, %s96
      %p110 = scmp.eq.s32.totalorder %s22, 1
      %p111 = por %p109, %p110
      %p113 = scmp.ne.s32.totalorder %s96, %s112
      %p114 = scmp.eq.s32.totalorder %s22, 0
      %p115 = por %p113, %p114
      %s116 = ssub.s32 %s23, %s35
      %s117 = ssub.s32 %s24, %s31
      %s118 = sor.u32 %s116, %s117
      %p119 = scmp.eq.s32.totalorder %s118, 0
      %s121 = sadd.s32 %s120, 1
      %s122 = scalar_select %p119, %s120, %s121
      %p125 = pneg %p119
      %p126 = scmp.eq.s32.totalorder %s16, 1
      %p127 = por %p125, %p126
      %p128 = scmp.ne.s32.totalorder %s120, %s123
      %p129 = scmp.eq.s32.totalorder %s16, 0
      %p130 = por %p128, %p129
      %p131 = scmp.ne.s32.totalorder %s120, %s123
      %p132 = scmp.eq.s32.totalorder %s21, 1
      %p133 = por %p131, %p132
      %p134 = scmp.ne.s32.totalorder %s123, %s124
      %p135 = scmp.eq.s32.totalorder %s21, 0
      %p136 = por %p134, %p135
      %p137 = scmp.ne.s32.totalorder %s123, %s124
      %p138 = scmp.eq.s32.totalorder %s22, 1
      %p139 = por %p137, %p138
      %p141 = scmp.ne.s32.totalorder %s124, %s140
      %p142 = scmp.eq.s32.totalorder %s22, 0
      %p143 = por %p141, %p142
      %p144 = scmp.le.s32.totalorder 1, %s16
      %p145 = scmp.lt.s32.totalorder %s16, 3
      %p146 = pnand %p144, %p145
      %p147 = pneg %p146
      // Predicated region
      $region9: #{tpu_custom_call.1} parent=5 // pred_check
        _
      $region10: #{tpu_custom_call.1} parent=5 // pred_check_branch
        %149 = sbr.rel (%p146) target = $region12
      $region11: #{tpu_custom_call.1} parent=5 // pred_region
        %s150 = ssub.s32 %s16, 1
        // Predicated region
        $region13: #{tpu_custom_call.1} parent=11 // pred_check
          %p151 = pneg %p82
        $region14: #{tpu_custom_call.1} parent=11 // pred_check_branch
          %153 = sbr.rel (%p151) target = $region16
        $region15: #{tpu_custom_call.1} parent=11 // pred_region
          %s154 = smul.u32 20, %s26
          %156 = vsyncadd [#allocation6], 0
          %s157 = scalar_lea.hbm %s1, %s154
          %s158 = sshll.u32 %s157, 4
          %s159 = int_to_ptr.hbm [resolvable:$true] %s158
          %s160 = sshll.u32 [#allocation5], 4
          %s161 = int_to_ptr.vmem [resolvable:$true] %s160
          %166 = dma.hbm_to_vmem [thread:$0]  %s159, 320, %s161, [#allocation6], 16, 16, 1
        $region16: #{tpu_custom_call.1} parent=11 // pred_fallthru
          _
        // Predicated region
        $region17: #{tpu_custom_call.1} parent=11 // pred_check
          %p167 = pneg %p108
        $region18: #{tpu_custom_call.1} parent=11 // pred_check_branch
          %169 = sbr.rel (%p167) target = $region20
        $region19: #{tpu_custom_call.1} parent=11 // pred_region
          %s170 = smul.u32 20, %s26
          %172 = vsyncadd [#allocation6], 0
          %s173 = scalar_lea.hbm %s2, %s170
          %s174 = sshll.u32 %s173, 4
          %s175 = int_to_ptr.hbm [resolvable:$true] %s174
          %s176 = sshll.u32 [#allocation7], 4
          %s177 = int_to_ptr.vmem [resolvable:$true] %s176
          %182 = dma.hbm_to_vmem [thread:$0]  %s175, 320, %s177, [#allocation6], 16, 16, 1
        $region20: #{tpu_custom_call.1} parent=11 // pred_fallthru
          _
      $region12: #{tpu_custom_call.1} parent=5 // pred_fallthru
        _
      %p183 = scmp.lt.s32.totalorder %s16, 2
      // Predicated region
      $region21: #{tpu_custom_call.1} parent=5 // pred_check
        %p184 = pneg %p183
      $region22: #{tpu_custom_call.1} parent=5 // pred_check_branch
        %186 = sbr.rel (%p184) target = $region24
      $region23: #{tpu_custom_call.1} parent=5 // pred_region
        // Predicated region
        $region25: #{tpu_custom_call.1} parent=23 // pred_check
          %p187 = pneg %p50
        $region26: #{tpu_custom_call.1} parent=23 // pred_check_branch
          %189 = sbr.rel (%p187) target = $region28
        $region27: #{tpu_custom_call.1} parent=23 // pred_region
          %s190 = sand.u32 %s40, 1
          %s191 = scalar_lea.sflag [#allocation3], %s190
          %s192 = sand.u32 %s40, 1
          %s193 = smul.addr %s192, 320
          %s194 = scalar_lea.vmem [#allocation2], %s193
          %s195 = smul.u32 20, %s24
          %197 = vsyncadd %s191, 0
          %s198 = smul.addr %s195, 2
          %s199 = smul.addr %s23, 40
          %s200 = sadd.s32 %s198, %s199
          %s201 = smul.addr %s200, 8
          %s202 = scalar_lea.hbm %s0, %s201
          %s203 = sshll.u32 %s202, 4
          %s204 = int_to_ptr.hbm [resolvable:$true] %s203
          %s205 = sshll.u32 %s194, 4
          %s206 = int_to_ptr.vmem [resolvable:$true] %s205
          %211 = dma.hbm_to_vmem [thread:$0]  %s204, 5120, %s206, %s191, 128, 128, 8
        $region28: #{tpu_custom_call.1} parent=23 // pred_fallthru
          _
      $region24: #{tpu_custom_call.1} parent=5 // pred_fallthru
        _
      %p212 = scmp.le.s32.totalorder 1, %s16
      %p213 = scmp.lt.s32.totalorder %s16, 3
      %p214 = pnand %p212, %p213
      %p215 = pneg %p214
      // Predicated region
      $region29: #{tpu_custom_call.1} parent=5 // pred_check
        _
      $region30: #{tpu_custom_call.1} parent=5 // pred_check_branch
        %217 = sbr.rel (%p214) target = $region32
      $region31: #{tpu_custom_call.1} parent=5 // pred_region
        %s218 = ssub.s32 %s16, 1
        %s219 = sand.u32 %s43, 1
        %s220 = scalar_lea.sflag [#allocation3], %s219
        %s221 = sand.u32 %s43, 1
        %s222 = smul.addr %s221, 320
        %s223 = scalar_lea.vmem [#allocation2], %s222
        // Predicated region
        $region33: #{tpu_custom_call.1} parent=31 // pred_check
          %p224 = pneg %p56
        $region34: #{tpu_custom_call.1} parent=31 // pred_check_branch
          %226 = sbr.rel (%p224) target = $region36
        $region35: #{tpu_custom_call.1} parent=31 // pred_region
          %228 = dma.done %s220, 5120
        $region36: #{tpu_custom_call.1} parent=31 // pred_fallthru
          _
        // Predicated region
        $region37: #{tpu_custom_call.1} parent=31 // pred_check
          %p229 = pneg %p82
        $region38: #{tpu_custom_call.1} parent=31 // pred_check_branch
          %231 = sbr.rel (%p229) target = $region40
        $region39: #{tpu_custom_call.1} parent=31 // pred_region
          %233 = dma.done [#allocation6], 320
        $region40: #{tpu_custom_call.1} parent=31 // pred_fallthru
          _
        // Predicated region
        $region41: #{tpu_custom_call.1} parent=31 // pred_check
          %p234 = pneg %p108
        $region42: #{tpu_custom_call.1} parent=31 // pred_check_branch
          %236 = sbr.rel (%p234) target = $region44
        $region43: #{tpu_custom_call.1} parent=31 // pred_region
          %238 = dma.done [#allocation6], 320
        $region44: #{tpu_custom_call.1} parent=31 // pred_fallthru
          _
        %s239 = sand.u32 %s43, 1
        %s240 = scalar_lea.sflag [#allocation3], %s239
        %s241 = sand.u32 %s43, 1
        %s242 = smul.addr %s241, 320
        %s243 = scalar_lea.vmem [#allocation2], %s242
        %p244 = pneg %p56
        %p245 = pneg %p53
        %p246 = pneg %p82
        %p247 = pneg %p79
        %p248 = pneg %p108
        %p249 = pneg %p105
        %p250 = pneg %p136
        %p251 = pneg %p133
        %s252 = sand.u32 %s123, 1
        %s253 = scalar_lea.sflag [#allocation4], %s252
        %s254 = sand.u32 %s123, 1
        %s255 = smul.addr %s254, 320
        %s256 = scalar_lea.vmem [#allocation8], %s255
        %s257 = smul.u32 20, %s26
        %s258 = smul.u32 20, %s26
        %s259 = smul.u32 20, %s26
        %s260 = smul.u32 20, %s26
        %v261 = vld [vmem:[%s223] sm:$0xff]
        %v262 = vld [vmem:[%s223 + $0x8] sm:$0xff]
        %v263 = vld [vmem:[%s223 + $0x10] sm:$0xff]
        %v264 = vld [vmem:[%s223 + $0x18] sm:$0xff]
        %v265 = vld [vmem:[%s223 + $0x20] sm:$0xff]
        %v266 = vld [vmem:[%s223 + $0x28] sm:$0xff]
        %v267 = vld [vmem:[%s223 + $0x30] sm:$0xff]
        %v268 = vld [vmem:[%s223 + $0x38] sm:$0xff]
        %v269 = vld [vmem:[%s223 + $0x40] sm:$0xff]
        %v270 = vld [vmem:[%s223 + $0x48] sm:$0xff]
        %v271 = vld [vmem:[%s223 + $0x50] sm:$0xff]
        %v272 = vld [vmem:[%s223 + $0x58] sm:$0xff]
        %v273 = vld [vmem:[%s223 + $0x60] sm:$0xff]
        %v274 = vld [vmem:[%s223 + $0x68] sm:$0xff]
        %v275 = vld [vmem:[%s223 + $0x70] sm:$0xff]
        %v276 = vld [vmem:[%s223 + $0x78] sm:$0xff]
        %v277 = vld [vmem:[%s223 + $0x80] sm:$0xff]
        %v278 = vld [vmem:[%s223 + $0x88] sm:$0xff]
        %v279 = vld [vmem:[%s223 + $0x90] sm:$0xff]
        %v280 = vld [vmem:[%s223 + $0x98] sm:$0xff]
        %v281 = vld [vmem:[%s223 + $0xa0] sm:$0xff]
        %v282 = vld [vmem:[%s223 + $0xa8] sm:$0xff]
        %v283 = vld [vmem:[%s223 + $0xb0] sm:$0xff]
        %v284 = vld [vmem:[%s223 + $0xb8] sm:$0xff]
        %v285 = vld [vmem:[%s223 + $0xc0] sm:$0xff]
        %v286 = vld [vmem:[%s223 + $0xc8] sm:$0xff]
        %v287 = vld [vmem:[%s223 + $0xd0] sm:$0xff]
        %v288 = vld [vmem:[%s223 + $0xd8] sm:$0xff]
        %v289 = vld [vmem:[%s223 + $0xe0] sm:$0xff]
        %v290 = vld [vmem:[%s223 + $0xe8] sm:$0xff]
        %v291 = vld [vmem:[%s223 + $0xf0] sm:$0xff]
        %v292 = vld [vmem:[%s223 + $0xf8] sm:$0xff]
        %v293 = vld [vmem:[%s223 + $0x100] sm:$0xff]
        %v294 = vld [vmem:[%s223 + $0x108] sm:$0xff]
        %v295 = vld [vmem:[%s223 + $0x110] sm:$0xff]
        %v296 = vld [vmem:[%s223 + $0x118] sm:$0xff]
        %v297 = vld [vmem:[%s223 + $0x120] sm:$0xff]
        %v298 = vld [vmem:[%s223 + $0x128] sm:$0xff]
        %v299 = vld [vmem:[%s223 + $0x130] sm:$0xff]
        %v300 = vld [vmem:[%s223 + $0x138] sm:$0xff]
        %309 = vrot.lane.b32.xlu0 %v261, 127
        %v310 = vpop.permute.xlu0 %309
        %311 = vrot.lane.b32.xlu0 %v262, 127
        %v312 = vpop.permute.xlu0 %311
        %313 = vrot.lane.b32.xlu0 %v271, 127
        %v314 = vpop.permute.xlu0 %313
        %315 = vrot.lane.b32.xlu0 %v272, 127
        %v316 = vpop.permute.xlu0 %315
        %317 = vrot.lane.b32.xlu0 %v281, 127
        %v318 = vpop.permute.xlu0 %317
        %319 = vrot.lane.b32.xlu0 %v282, 127
        %v320 = vpop.permute.xlu0 %319
        %321 = vrot.lane.b32.xlu0 %v291, 127
        %v322 = vpop.permute.xlu0 %321
        %323 = vrot.lane.b32.xlu0 %v292, 127
        %v324 = vpop.permute.xlu0 %323
        %341 = vrot.lane.b32.xlu0 %v263, 1
        %v342 = vpop.permute.xlu0 %341
        %343 = vrot.lane.b32.xlu0 %v264, 1
        %v344 = vpop.permute.xlu0 %343
        %345 = vrot.lane.b32.xlu0 %v273, 1
        %v346 = vpop.permute.xlu0 %345
        %347 = vrot.lane.b32.xlu0 %v274, 1
        %v348 = vpop.permute.xlu0 %347
        %349 = vrot.lane.b32.xlu0 %v283, 1
        %v350 = vpop.permute.xlu0 %349
        %351 = vrot.lane.b32.xlu0 %v284, 1
        %v352 = vpop.permute.xlu0 %351
        %353 = vrot.lane.b32.xlu0 %v293, 1
        %v354 = vpop.permute.xlu0 %353
        %355 = vrot.lane.b32.xlu0 %v294, 1
        %v356 = vpop.permute.xlu0 %355
        %vm373 = vcmask 1046528
        %v374 = vrot.slane %v265, 1
        %v375 = vrot.slane %v266, 1
        %v376 = vsel %vm373, %v374, %v375
        %v377 = vrot.slane %v275, 1
        %v378 = vrot.slane %v276, 1
        %v379 = vsel %vm373, %v377, %v378
        %v380 = vrot.slane %v285, 1
        %v381 = vrot.slane %v286, 1
        %v382 = vsel %vm373, %v380, %v381
        %v383 = vrot.slane %v295, 1
        %v384 = vrot.slane %v296, 1
        %v385 = vsel %vm373, %v383, %v384
        %v398 = vsel %vm373, %v375, %v374
        %v399 = vsel %vm373, %v378, %v377
        %v400 = vsel %vm373, %v381, %v380
        %v401 = vsel %vm373, %v384, %v383
        %v406 = vrot.slane %v268, 7
        %v407 = vrot.slane %v278, 7
        %v408 = vrot.slane %v288, 7
        %v409 = vrot.slane %v298, 7
        %vm418 = vcmask 1040384
        %v419 = vrot.slane %v267, 7
        %v420 = vsel %vm418, %v419, %v406
        %v421 = vrot.slane %v277, 7
        %v422 = vsel %vm418, %v421, %v407
        %v423 = vrot.slane %v287, 7
        %v424 = vsel %vm418, %v423, %v408
        %v425 = vrot.slane %v297, 7
        %v426 = vsel %vm418, %v425, %v409
        %v435 = vsel %vm418, %v406, %v419
        %v436 = vsel %vm418, %v407, %v421
        %v437 = vsel %vm418, %v408, %v423
        %v438 = vsel %vm418, %v409, %v425
        %v439 = vsub.f32 %v310, %v261
        %v440 = vsub.f32 %v312, %v262
        %v441 = vsub.f32 %v342, %v263
        %v442 = vsub.f32 %v344, %v264
        %v443 = vsub.f32 %v376, %v265
        %v444 = vsub.f32 %v398, %v266
        %v445 = vsub.f32 %v435, %v267
        %v446 = vsub.f32 %v420, %v268
        %v447 = vsub.f32 %v269, %v269
        %v448 = vsub.f32 %v270, %v270
        %v449 = vsub.f32 %v314, %v271
        %v450 = vsub.f32 %v316, %v272
        %v451 = vsub.f32 %v346, %v273
        %v452 = vsub.f32 %v348, %v274
        %v453 = vsub.f32 %v379, %v275
        %v454 = vsub.f32 %v399, %v276
        %v455 = vsub.f32 %v436, %v277
        %v456 = vsub.f32 %v422, %v278
        %v457 = vsub.f32 %v279, %v279
        %v458 = vsub.f32 %v280, %v280
        %v459 = vsub.f32 %v318, %v281
        %v460 = vsub.f32 %v320, %v282
        %v461 = vsub.f32 %v350, %v283
        %v462 = vsub.f32 %v352, %v284
        %v463 = vsub.f32 %v382, %v285
        %v464 = vsub.f32 %v400, %v286
        %v465 = vsub.f32 %v437, %v287
        %v466 = vsub.f32 %v424, %v288
        %v467 = vsub.f32 %v289, %v289
        %v468 = vsub.f32 %v290, %v290
        %v469 = vsub.f32 %v322, %v291
        %v470 = vsub.f32 %v324, %v292
        %v471 = vsub.f32 %v354, %v293
        %v472 = vsub.f32 %v356, %v294
        %v473 = vsub.f32 %v385, %v295
        %v474 = vsub.f32 %v401, %v296
        %v475 = vsub.f32 %v438, %v297
        %v476 = vsub.f32 %v426, %v298
        %v477 = vsub.f32 %v299, %v299
        %v478 = vsub.f32 %v300, %v300
        %v479 = vld [vmem:[#allocation5] sm:$0x1]
        %v480 = vld [vmem:[#allocation5 + $0x1] sm:$0x1]
        %v481 = vld [vmem:[#allocation5 + $0x2] sm:$0x1]
        %v482 = vld [vmem:[#allocation5 + $0x3] sm:$0x1]
        %v483 = vld [vmem:[#allocation5 + $0x4] sm:$0x1]
        %v484 = vld [vmem:[#allocation5 + $0x5] sm:$0x1]
        %v485 = vld [vmem:[#allocation5 + $0x6] sm:$0x1]
        %v486 = vld [vmem:[#allocation5 + $0x7] sm:$0x1]
        %v487 = vld [vmem:[#allocation5 + $0x8] sm:$0x1]
        %v488 = vld [vmem:[#allocation5 + $0x9] sm:$0x1]
        %v489 = vld [vmem:[#allocation5 + $0xa] sm:$0x1]
        %v490 = vld [vmem:[#allocation5 + $0xb] sm:$0x1]
        %v491 = vld [vmem:[#allocation5 + $0xc] sm:$0x1]
        %v492 = vld [vmem:[#allocation5 + $0xd] sm:$0x1]
        %v493 = vld [vmem:[#allocation5 + $0xe] sm:$0x1]
        %v494 = vld [vmem:[#allocation5 + $0xf] sm:$0x1]
        %v495 = vld [vmem:[#allocation5 + $0x10] sm:$0x1]
        %v496 = vld [vmem:[#allocation5 + $0x11] sm:$0x1]
        %v497 = vld [vmem:[#allocation5 + $0x12] sm:$0x1]
        %v498 = vld [vmem:[#allocation5 + $0x13] sm:$0x1]
        %v519 = vperm.slane %v479, 0
        %v520 = vperm.slane %v480, 0
        %v521 = vperm.slane %v481, 0
        %v522 = vperm.slane %v482, 0
        %v523 = vperm.slane %v483, 0
        %v524 = vperm.slane %v484, 0
        %v525 = vperm.slane %v485, 0
        %v526 = vperm.slane %v486, 0
        %v527 = vperm.slane %v487, 0
        %v528 = vperm.slane %v488, 0
        %v529 = vperm.slane %v489, 0
        %v530 = vperm.slane %v490, 0
        %v531 = vperm.slane %v491, 0
        %v532 = vperm.slane %v492, 0
        %v533 = vperm.slane %v493, 0
        %v534 = vperm.slane %v494, 0
        %v535 = vperm.slane %v495, 0
        %v536 = vperm.slane %v496, 0
        %v537 = vperm.slane %v497, 0
        %v538 = vperm.slane %v498, 0
        %v559 = vmul.f32 %v439, %v519
        %v560 = vmul.f32 %v440, %v519
        %v561 = vmul.f32 %v441, %v520
        %v562 = vmul.f32 %v442, %v520
        %v563 = vmul.f32 %v443, %v521
        %v564 = vmul.f32 %v444, %v521
        %v565 = vmul.f32 %v445, %v522
        %v566 = vmul.f32 %v446, %v522
        %v567 = vmul.f32 %v447, %v523
        %v568 = vmul.f32 %v448, %v523
        %v569 = vmul.f32 %v449, %v524
        %v570 = vmul.f32 %v450, %v524
        %v571 = vmul.f32 %v451, %v525
        %v572 = vmul.f32 %v452, %v525
        %v573 = vmul.f32 %v453, %v526
        %v574 = vmul.f32 %v454, %v526
        %v575 = vmul.f32 %v455, %v527
        %v576 = vmul.f32 %v456, %v527
        %v577 = vmul.f32 %v457, %v528
        %v578 = vmul.f32 %v458, %v528
        %v579 = vmul.f32 %v459, %v529
        %v580 = vmul.f32 %v460, %v529
        %v581 = vmul.f32 %v461, %v530
        %v582 = vmul.f32 %v462, %v530
        %v583 = vmul.f32 %v463, %v531
        %v584 = vmul.f32 %v464, %v531
        %v585 = vmul.f32 %v465, %v532
        %v586 = vmul.f32 %v466, %v532
        %v587 = vmul.f32 %v467, %v533
        %v588 = vmul.f32 %v468, %v533
        %v589 = vmul.f32 %v469, %v534
        %v590 = vmul.f32 %v470, %v534
        %v591 = vmul.f32 %v471, %v535
        %v592 = vmul.f32 %v472, %v535
        %v593 = vmul.f32 %v473, %v536
        %v594 = vmul.f32 %v474, %v536
        %v595 = vmul.f32 %v475, %v537
        %v596 = vmul.f32 %v476, %v537
        %v597 = vmul.f32 %v477, %v538
        %v598 = vmul.f32 %v478, %v538
        %v599 = vld [vmem:[#allocation7] sm:$0x1]
        %v600 = vld [vmem:[#allocation7 + $0x1] sm:$0x1]
        %v601 = vld [vmem:[#allocation7 + $0x2] sm:$0x1]
        %v602 = vld [vmem:[#allocation7 + $0x3] sm:$0x1]
        %v603 = vld [vmem:[#allocation7 + $0x4] sm:$0x1]
        %v604 = vld [vmem:[#allocation7 + $0x5] sm:$0x1]
        %v605 = vld [vmem:[#allocation7 + $0x6] sm:$0x1]
        %v606 = vld [vmem:[#allocation7 + $0x7] sm:$0x1]
        %v607 = vld [vmem:[#allocation7 + $0x8] sm:$0x1]
        %v608 = vld [vmem:[#allocation7 + $0x9] sm:$0x1]
        %v609 = vld [vmem:[#allocation7 + $0xa] sm:$0x1]
        %v610 = vld [vmem:[#allocation7 + $0xb] sm:$0x1]
        %v611 = vld [vmem:[#allocation7 + $0xc] sm:$0x1]
        %v612 = vld [vmem:[#allocation7 + $0xd] sm:$0x1]
        %v613 = vld [vmem:[#allocation7 + $0xe] sm:$0x1]
        %v614 = vld [vmem:[#allocation7 + $0xf] sm:$0x1]
        %v615 = vld [vmem:[#allocation7 + $0x10] sm:$0x1]
        %v616 = vld [vmem:[#allocation7 + $0x11] sm:$0x1]
        %v617 = vld [vmem:[#allocation7 + $0x12] sm:$0x1]
        %v618 = vld [vmem:[#allocation7 + $0x13] sm:$0x1]
        %v639 = vperm.slane %v599, 0
        %v640 = vperm.slane %v600, 0
        %v641 = vperm.slane %v601, 0
        %v642 = vperm.slane %v602, 0
        %v643 = vperm.slane %v603, 0
        %v644 = vperm.slane %v604, 0
        %v645 = vperm.slane %v605, 0
        %v646 = vperm.slane %v606, 0
        %v647 = vperm.slane %v607, 0
        %v648 = vperm.slane %v608, 0
        %v649 = vperm.slane %v609, 0
        %v650 = vperm.slane %v610, 0
        %v651 = vperm.slane %v611, 0
        %v652 = vperm.slane %v612, 0
        %v653 = vperm.slane %v613, 0
        %v654 = vperm.slane %v614, 0
        %v655 = vperm.slane %v615, 0
        %v656 = vperm.slane %v616, 0
        %v657 = vperm.slane %v617, 0
        %v658 = vperm.slane %v618, 0
        %v679 = vadd.f32 %v559, %v639
        %v680 = vadd.f32 %v560, %v639
        %v681 = vadd.f32 %v561, %v640
        %v682 = vadd.f32 %v562, %v640
        %v683 = vadd.f32 %v563, %v641
        %v684 = vadd.f32 %v564, %v641
        %v685 = vadd.f32 %v565, %v642
        %v686 = vadd.f32 %v566, %v642
        %v687 = vadd.f32 %v567, %v643
        %v688 = vadd.f32 %v568, %v643
        %v689 = vadd.f32 %v569, %v644
        %v690 = vadd.f32 %v570, %v644
        %v691 = vadd.f32 %v571, %v645
        %v692 = vadd.f32 %v572, %v645
        %v693 = vadd.f32 %v573, %v646
        %v694 = vadd.f32 %v574, %v646
        %v695 = vadd.f32 %v575, %v647
        %v696 = vadd.f32 %v576, %v647
        %v697 = vadd.f32 %v577, %v648
        %v698 = vadd.f32 %v578, %v648
        %v699 = vadd.f32 %v579, %v649
        %v700 = vadd.f32 %v580, %v649
        %v701 = vadd.f32 %v581, %v650
        %v702 = vadd.f32 %v582, %v650
        %v703 = vadd.f32 %v583, %v651
        %v704 = vadd.f32 %v584, %v651
        %v705 = vadd.f32 %v585, %v652
        %v706 = vadd.f32 %v586, %v652
        %v707 = vadd.f32 %v587, %v653
        %v708 = vadd.f32 %v588, %v653
        %v709 = vadd.f32 %v589, %v654
        %v710 = vadd.f32 %v590, %v654
        %v711 = vadd.f32 %v591, %v655
        %v712 = vadd.f32 %v592, %v655
        %v713 = vadd.f32 %v593, %v656
        %v714 = vadd.f32 %v594, %v656
        %v715 = vadd.f32 %v595, %v657
        %v716 = vadd.f32 %v596, %v657
        %v717 = vadd.f32 %v597, %v658
        %v718 = vadd.f32 %v598, %v658
        %719 = vst [vmem:[%s256] sm:$0xff] %v679
        %720 = vst [vmem:[%s256 + $0x8] sm:$0xff] %v680
        %721 = vst [vmem:[%s256 + $0x10] sm:$0xff] %v681
        %722 = vst [vmem:[%s256 + $0x18] sm:$0xff] %v682
        %723 = vst [vmem:[%s256 + $0x20] sm:$0xff] %v683
        %724 = vst [vmem:[%s256 + $0x28] sm:$0xff] %v684
        %725 = vst [vmem:[%s256 + $0x30] sm:$0xff] %v685
        %726 = vst [vmem:[%s256 + $0x38] sm:$0xff] %v686
        %727 = vst [vmem:[%s256 + $0x40] sm:$0xff] %v687
        %728 = vst [vmem:[%s256 + $0x48] sm:$0xff] %v688
        %729 = vst [vmem:[%s256 + $0x50] sm:$0xff] %v689
        %730 = vst [vmem:[%s256 + $0x58] sm:$0xff] %v690
        %731 = vst [vmem:[%s256 + $0x60] sm:$0xff] %v691
        %732 = vst [vmem:[%s256 + $0x68] sm:$0xff] %v692
        %733 = vst [vmem:[%s256 + $0x70] sm:$0xff] %v693
        %734 = vst [vmem:[%s256 + $0x78] sm:$0xff] %v694
        %735 = vst [vmem:[%s256 + $0x80] sm:$0xff] %v695
        %736 = vst [vmem:[%s256 + $0x88] sm:$0xff] %v696
        %737 = vst [vmem:[%s256 + $0x90] sm:$0xff] %v697
        %738 = vst [vmem:[%s256 + $0x98] sm:$0xff] %v698
        %739 = vst [vmem:[%s256 + $0xa0] sm:$0xff] %v699
        %740 = vst [vmem:[%s256 + $0xa8] sm:$0xff] %v700
        %741 = vst [vmem:[%s256 + $0xb0] sm:$0xff] %v701
        %742 = vst [vmem:[%s256 + $0xb8] sm:$0xff] %v702
        %743 = vst [vmem:[%s256 + $0xc0] sm:$0xff] %v703
        %744 = vst [vmem:[%s256 + $0xc8] sm:$0xff] %v704
        %745 = vst [vmem:[%s256 + $0xd0] sm:$0xff] %v705
        %746 = vst [vmem:[%s256 + $0xd8] sm:$0xff] %v706
        %747 = vst [vmem:[%s256 + $0xe0] sm:$0xff] %v707
        %748 = vst [vmem:[%s256 + $0xe8] sm:$0xff] %v708
        %749 = vst [vmem:[%s256 + $0xf0] sm:$0xff] %v709
        %750 = vst [vmem:[%s256 + $0xf8] sm:$0xff] %v710
        %751 = vst [vmem:[%s256 + $0x100] sm:$0xff] %v711
        %752 = vst [vmem:[%s256 + $0x108] sm:$0xff] %v712
        %753 = vst [vmem:[%s256 + $0x110] sm:$0xff] %v713
        %754 = vst [vmem:[%s256 + $0x118] sm:$0xff] %v714
        %755 = vst [vmem:[%s256 + $0x120] sm:$0xff] %v715
        %756 = vst [vmem:[%s256 + $0x128] sm:$0xff] %v716
        %757 = vst [vmem:[%s256 + $0x130] sm:$0xff] %v717
        %758 = vst [vmem:[%s256 + $0x138] sm:$0xff] %v718
        %s759 = sand.u32 %s123, 1
        %s760 = scalar_lea.sflag [#allocation4], %s759
        %s761 = sand.u32 %s123, 1
        %s762 = smul.addr %s761, 320
        %s763 = scalar_lea.vmem [#allocation8], %s762
        // Predicated region
        $region45: #{tpu_custom_call.1} parent=31 // pred_check
          %p764 = pneg %p133
        $region46: #{tpu_custom_call.1} parent=31 // pred_check_branch
          %766 = sbr.rel (%p764) target = $region48
        $region47: #{tpu_custom_call.1} parent=31 // pred_region
          %s767 = smul.u32 20, %s26
          %769 = vsyncadd %s760, 0
          %s770 = smul.addr %s767, 2
          %s771 = smul.addr %s25, 40
          %s772 = sadd.s32 %s770, %s771
          %s773 = smul.addr %s772, 8
          %s774 = scalar_lea.hbm %s3, %s773
          %s775 = sshll.u32 %s763, 4
          %s776 = int_to_ptr.vmem [resolvable:$true] %s775
          %s777 = sshll.u32 %s774, 4
          %s778 = int_to_ptr.hbm [resolvable:$true] %s777
          %783 = dma.vmem_to_hbm [thread:$0]  %s776, 5120, %s778, %s760, 128, 128, 8
        $region48: #{tpu_custom_call.1} parent=31 // pred_fallthru
          _
      $region32: #{tpu_custom_call.1} parent=5 // pred_fallthru
        _
      %p784 = scmp.le.s32.totalorder 2, %s16
      // Predicated region
      $region49: #{tpu_custom_call.1} parent=5 // pred_check
        %p785 = pneg %p784
      $region50: #{tpu_custom_call.1} parent=5 // pred_check_branch
        %787 = sbr.rel (%p785) target = $region52
      $region51: #{tpu_custom_call.1} parent=5 // pred_region
        %s788 = ssub.s32 %s16, 2
        // Predicated region
        $region53: #{tpu_custom_call.1} parent=51 // pred_check
          %p789 = pneg %p139
        $region54: #{tpu_custom_call.1} parent=51 // pred_check_branch
          %791 = sbr.rel (%p789) target = $region56
        $region55: #{tpu_custom_call.1} parent=51 // pred_region
          %s792 = sand.u32 %s124, 1
          %s793 = scalar_lea.sflag [#allocation4], %s792
          %s794 = sand.u32 %s124, 1
          %s795 = smul.addr %s794, 320
          %s796 = scalar_lea.vmem [#allocation8], %s795
          %798 = dma.done %s793, 5120
        $region56: #{tpu_custom_call.1} parent=51 // pred_fallthru
          _
      $region52: #{tpu_custom_call.1} parent=5 // pred_fallthru
        _
    $region6: #{tpu_custom_call.1} parent=1 // loop_footer
      %s20 = sadd.s32 1, %s16
    $region7: #{tpu_custom_call.1} parent=1 // loop_footer_branch
      %15 = sbr.rel target = $region3
    $region8: #{tpu_custom_call.1} parent=1 // loop_exit
      _
    %799 = vsyncpa [#allocation3], 1
    %s800 = scalar_lea.sflag [#allocation3], 1
    %801 = vsyncpa %s800, 1
    %802 = vsyncpa [#allocation6], 1
    %803 = vsyncpa [#allocation4], 1
    %s804 = scalar_lea.sflag [#allocation4], 1
    %805 = vsyncpa %s804, 1

</llo_original>
